<compile_context>
chip_gen: v6e
topology: v6e:2x2x1
jax: 0.10.0
libtpu: 0.0.40
codegen_flags: <defaults>
</compile_context>

<pallas_src>
import jax
import jax.numpy as jnp
from jax.experimental import pallas as pl
from jax.experimental.pallas import tpu as pltpu

N, F, H1, H2 = 32, 16, 128, 128   # nodes, in-features, hidden, out (lane-dense H)
E = 64                            # number of directed edges
V = 3                             # views: original, aug1, aug2


def gcn_encoder_kernel(a_ref, dinv_ref, x_ref, m_ref, w1_ref, w2_ref, o_ref):
    """Single invocation, all 3 views.

    a_ref   : (V, N, N)  bf16  raw adjacency + self loops (per-view edge weights)
    dinv_ref: (V, N, 1)  f32   D^-1/2 per view (precomputed in wrapper)
    x_ref   : (N, F)     bf16  shared node features
    m_ref   : (V, 1, F)  bf16  per-view feature masks (view 0 is all-ones)
    w1_ref  : (F, H1)    bf16
    w2_ref  : (H1, H2)   bf16
    o_ref   : (V, N, H2) f32
    """
    n_views, n_nodes, _ = a_ref.shape
    vn = n_views * n_nodes

    a = a_ref[...]                                                    # (V, N, N) bf16
    x = x_ref[...]                                                    # (N, F)    bf16
    m = m_ref[...]                                                    # (V, 1, F) bf16
    dinv = jnp.concatenate([dinv_ref[v] for v in range(n_views)],
                           axis=0)                                    # (3N, 1)  f32

    # ---- block-diagonal adjacency for all views, assembled in vregs only ----
    rows = []
    for v in range(n_views):
        pieces = []
        if v > 0:
            pieces.append(jnp.zeros((n_nodes, v * n_nodes), a.dtype))
        pieces.append(a[v])
        if v < n_views - 1:
            pieces.append(jnp.zeros((n_nodes, (n_views - 1 - v) * n_nodes), a.dtype))
        rows.append(jnp.concatenate(pieces, axis=1))
    bd = jnp.concatenate(rows, axis=0)                                # (3N, 3N) bf16

    # ---- masked features, all views stacked: (3N, F) ----
    xs = jnp.concatenate([x * m[v] for v in range(n_views)], axis=0)  # (3N, F) bf16

    # ---- fused first weight matmul across views ----
    xw = jnp.dot(xs, w1_ref[...],
                 preferred_element_type=jnp.float32)                  # (3N, H1) f32

    # ---- first graph propagation (one block-diag MXU pass) + ReLU ----
    s = (xw * dinv).astype(jnp.bfloat16)
    h = jnp.dot(bd, s, preferred_element_type=jnp.float32)            # (3N, H1) f32
    h = jnp.maximum(h * dinv, 0.0).astype(jnp.bfloat16)

    # ---- fused second weight matmul across views ----
    hw = jnp.dot(h, w2_ref[...],
                 preferred_element_type=jnp.float32)                  # (3N, H2) f32

    # ---- second graph propagation (one block-diag MXU pass) ----
    t = (hw * dinv).astype(jnp.bfloat16)
    z = jnp.dot(bd, t, preferred_element_type=jnp.float32)            # (3N, H2) f32
    z = z * dinv

    # ---- lane-dense (H2 = 128) per-view stores ----
    for v in range(n_views):
        o_ref[v] = z[v * n_nodes:(v + 1) * n_nodes].astype(o_ref.dtype)


def gcn_encoder_views(a_stack, dinv, x, mask, w1, w2):
    """a_stack: (V,N,N) bf16; dinv: (V,N,1) f32; x: (N,F) bf16; mask: (V,1,F) bf16."""
    n_views, n_nodes, _ = a_stack.shape
    f_in, h1 = w1.shape
    h2 = w2.shape[1]
    vn = n_views * n_nodes

    flops = (2 * vn * f_in * h1        # XW1 (fused across views)
             + 2 * vn * vn * h1        # block-diag A @ (first hop)
             + 2 * vn * h1 * h2        # HW2 (fused across views)
             + 2 * vn * vn * h2)       # block-diag A @ (second hop)
    bytes_accessed = (a_stack.size * 2 + dinv.size * 4 + x.size * 2 + mask.size * 2
                      + w1.size * 2 + w2.size * 2 + vn * h2 * 4)

    vmem_spec = pl.BlockSpec(memory_space=pltpu.MemorySpace.VMEM)

    return pl.pallas_call(
        gcn_encoder_kernel,
        out_shape=jax.ShapeDtypeStruct((n_views, n_nodes, h2), jnp.float32),
        in_specs=[vmem_spec] * 6,
        out_specs=vmem_spec,
        compiler_params=pltpu.CompilerParams(vmem_limit_bytes=32 * 1024 * 1024),
        cost_estimate=pl.CostEstimate(flops=flops,
                                      transcendentals=0,
                                      bytes_accessed=bytes_accessed),
    )(a_stack, dinv, x, mask, w1, w2)


@jax.jit
def encoder_forward(x_bf16, edge_index, edge_weight, w1_bf16, w2_bf16, aug_key):
    """Mirrors Encoder.forward: returns (z, z1, z2)."""
    n_nodes, f_in = x_bf16.shape
    k1e, k1f, k2e, k2f = jax.random.split(aug_key, 4)

    # aug1: EdgeRemoving(pe=0.3) + FeatureMasking(pf=0.3)
    ew1 = jnp.where(jax.random.bernoulli(k1e, 0.7, edge_weight.shape), edge_weight, 0.0)
    m1 = jax.random.bernoulli(k1f, 0.7, (1, f_in)).astype(jnp.bfloat16)
    # aug2: EdgeRemoving(pe=0.2) + FeatureMasking(pf=0.2)
    ew2 = jnp.where(jax.random.bernoulli(k2e, 0.8, edge_weight.shape), edge_weight, 0.0)
    m2 = jax.random.bernoulli(k2f, 0.8, (1, f_in)).astype(jnp.bfloat16)

    ew_stack = jnp.stack([edge_weight, ew1, ew2])                     # (V, E)   f32
    mask = jnp.stack([jnp.ones((1, f_in), jnp.bfloat16), m1, m2])     # (V, 1, F) bf16

    src, dst = edge_index[0], edge_index[1]

    def adj_plus_I(ew):
        # NOTE: self loops added unconditionally; directed scatter (matches prior impl).
        adj = jnp.zeros((n_nodes, n_nodes), jnp.float32).at[src, dst].add(ew)
        return adj + jnp.eye(n_nodes, dtype=jnp.float32)

    a_f32 = jax.vmap(adj_plus_I)(ew_stack)                            # (V, N, N) f32
    # D^-1/2 computed in f32 once here; kernel only sees bf16 A (exact for 0/1 weights).
    dinv = jax.lax.rsqrt(jnp.sum(a_f32, axis=-1, keepdims=True))      # (V, N, 1) f32
    a_bf16 = a_f32.astype(jnp.bfloat16)

    z_stack = gcn_encoder_views(a_bf16, dinv, x_bf16, mask, w1_bf16, w2_bf16)
    return z_stack[0], z_stack[1], z_stack[2]


if __name__ == "__main__":
    key = jax.random.PRNGKey(0)
    kx, ke, kw1, kw2, kaug = jax.random.split(key, 5)

    # deterministic synthetic graph + parameters (weights stored in bf16, cast once)
    x = jax.random.normal(kx, (N, F), dtype=jnp.float32).astype(jnp.bfloat16)
    edge_index = jax.random.randint(ke, (2, E), 0, N, dtype=jnp.int32)
    edge_weight = jnp.ones((E,), dtype=jnp.float32)
    w1 = (jax.random.normal(kw1, (F, H1), dtype=jnp.float32)
          * (1.0 / jnp.sqrt(F))).astype(jnp.bfloat16)
    w2 = (jax.random.normal(kw2, (H1, H2), dtype=jnp.float32)
          * (1.0 / jnp.sqrt(H1))).astype(jnp.bfloat16)

    z, z1, z2 = encoder_forward(x, edge_index, edge_weight, w1, w2, kaug)
    jax.block_until_ready((z, z1, z2))
    assert z.shape == (N, H2) and z1.shape == (N, H2) and z2.shape == (N, H2)
    assert bool(jnp.all(jnp.isfinite(z))) and bool(jnp.all(jnp.isfinite(z1))) \
        and bool(jnp.all(jnp.isfinite(z2)))
    print("KERNEL_OK")
</pallas_src>

<mosaic_0001>
module attributes {stable_mosaic.version = 11 : i64} {
  func.func @gcn_encoder_kernel(%arg0: memref<3x32x32xbf16, #tpu.memory_space<vmem>>, %arg1: memref<3x32x1xf32, #tpu.memory_space<vmem>>, %arg2: memref<32x16xbf16, #tpu.memory_space<vmem>>, %arg3: memref<3x1x16xbf16, #tpu.memory_space<vmem>>, %arg4: memref<16x128xbf16, #tpu.memory_space<vmem>>, %arg5: memref<128x128xbf16, #tpu.memory_space<vmem>>, %arg6: memref<3x32x128xf32, #tpu.memory_space<vmem>>) attributes {dimension_semantics = [], scalar_prefetch = 0 : i64, scratch_operands = 0 : i64, tpu.core_type = #tpu.core_type<tc>} {
    %c0 = arith.constant 0 : index
    %c0_0 = arith.constant 0 : index
    %c0_1 = arith.constant 0 : index
    %0 = vector.load %arg0[%c0, %c0_0, %c0_1] : memref<3x32x32xbf16, #tpu.memory_space<vmem>>, vector<3x32x32xbf16>
    %c0_2 = arith.constant 0 : index
    %c0_3 = arith.constant 0 : index
    %1 = vector.load %arg2[%c0_2, %c0_3] : memref<32x16xbf16, #tpu.memory_space<vmem>>, vector<32x16xbf16>
    %c0_4 = arith.constant 0 : index
    %c0_5 = arith.constant 0 : index
    %c0_6 = arith.constant 0 : index
    %2 = vector.load %arg3[%c0_4, %c0_5, %c0_6] : memref<3x1x16xbf16, #tpu.memory_space<vmem>>, vector<3x1x16xbf16>
    %c0_7 = arith.constant 0 : index
    %c0_8 = arith.constant 0 : index
    %c0_9 = arith.constant 0 : index
    %3 = vector.load %arg1[%c0_7, %c0_8, %c0_9] : memref<3x32x1xf32, #tpu.memory_space<vmem>>, vector<1x32x1xf32>
    %4 = vector.shape_cast %3 : vector<1x32x1xf32> to vector<32x1xf32>
    %c1 = arith.constant 1 : index
    %c0_10 = arith.constant 0 : index
    %c0_11 = arith.constant 0 : index
    %5 = vector.load %arg1[%c1, %c0_10, %c0_11] : memref<3x32x1xf32, #tpu.memory_space<vmem>>, vector<1x32x1xf32>
    %6 = vector.shape_cast %5 : vector<1x32x1xf32> to vector<32x1xf32>
    %c2 = arith.constant 2 : index
    %c0_12 = arith.constant 0 : index
    %c0_13 = arith.constant 0 : index
    %7 = vector.load %arg1[%c2, %c0_12, %c0_13] : memref<3x32x1xf32, #tpu.memory_space<vmem>>, vector<1x32x1xf32>
    %8 = vector.shape_cast %7 : vector<1x32x1xf32> to vector<32x1xf32>
    %9 = tpu.concatenate %4, %6, %8 in 0 : vector<32x1xf32>, vector<32x1xf32>, vector<32x1xf32> -> vector<96x1xf32>
    %10 = vector.extract_strided_slice %0 {offsets = [0, 0, 0], sizes = [1, 32, 32], strides = [1, 1, 1]} : vector<3x32x32xbf16> to vector<1x32x32xbf16>
    %11 = vector.shape_cast %10 : vector<1x32x32xbf16> to vector<32x32xbf16>
    %cst = arith.constant 0.000000e+00 : bf16
    %12 = vector.broadcast %cst : bf16 to vector<32x64xbf16>
    %13 = tpu.concatenate %11, %12 in 1 : vector<32x32xbf16>, vector<32x64xbf16> -> vector<32x96xbf16>
    %cst_14 = arith.constant 0.000000e+00 : bf16
    %14 = vector.broadcast %cst_14 : bf16 to vector<32x32xbf16>
    %15 = vector.extract_strided_slice %0 {offsets = [1, 0, 0], sizes = [1, 32, 32], strides = [1, 1, 1]} : vector<3x32x32xbf16> to vector<1x32x32xbf16>
    %16 = vector.shape_cast %15 : vector<1x32x32xbf16> to vector<32x32xbf16>
    %cst_15 = arith.constant 0.000000e+00 : bf16
    %17 = vector.broadcast %cst_15 : bf16 to vector<32x32xbf16>
    %18 = tpu.concatenate %14, %16, %17 in 1 : vector<32x32xbf16>, vector<32x32xbf16>, vector<32x32xbf16> -> vector<32x96xbf16>
    %cst_16 = arith.constant 0.000000e+00 : bf16
    %19 = vector.broadcast %cst_16 : bf16 to vector<32x64xbf16>
    %20 = vector.extract_strided_slice %0 {offsets = [2, 0, 0], sizes = [1, 32, 32], strides = [1, 1, 1]} : vector<3x32x32xbf16> to vector<1x32x32xbf16>
    %21 = vector.shape_cast %20 : vector<1x32x32xbf16> to vector<32x32xbf16>
    %22 = tpu.concatenate %19, %21 in 1 : vector<32x64xbf16>, vector<32x32xbf16> -> vector<32x96xbf16>
    %23 = tpu.concatenate %13, %18, %22 in 0 : vector<32x96xbf16>, vector<32x96xbf16>, vector<32x96xbf16> -> vector<96x96xbf16>
    %24 = vector.extract_strided_slice %2 {offsets = [0, 0, 0], sizes = [1, 1, 16], strides = [1, 1, 1]} : vector<3x1x16xbf16> to vector<1x1x16xbf16>
    %25 = vector.shape_cast %24 : vector<1x1x16xbf16> to vector<1x16xbf16>
    %26 = vector.broadcast %25 : vector<1x16xbf16> to vector<32x16xbf16>
    %27 = arith.mulf %1, %26 : vector<32x16xbf16>
    %28 = vector.extract_strided_slice %2 {offsets = [1, 0, 0], sizes = [1, 1, 16], strides = [1, 1, 1]} : vector<3x1x16xbf16> to vector<1x1x16xbf16>
    %29 = vector.shape_cast %28 : vector<1x1x16xbf16> to vector<1x16xbf16>
    %30 = vector.broadcast %29 : vector<1x16xbf16> to vector<32x16xbf16>
    %31 = arith.mulf %1, %30 : vector<32x16xbf16>
    %32 = vector.extract_strided_slice %2 {offsets = [2, 0, 0], sizes = [1, 1, 16], strides = [1, 1, 1]} : vector<3x1x16xbf16> to vector<1x1x16xbf16>
    %33 = vector.shape_cast %32 : vector<1x1x16xbf16> to vector<1x16xbf16>
    %34 = vector.broadcast %33 : vector<1x16xbf16> to vector<32x16xbf16>
    %35 = arith.mulf %1, %34 : vector<32x16xbf16>
    %36 = tpu.concatenate %27, %31, %35 in 0 : vector<32x16xbf16>, vector<32x16xbf16>, vector<32x16xbf16> -> vector<96x16xbf16>
    %c0_17 = arith.constant 0 : index
    %c0_18 = arith.constant 0 : index
    %37 = vector.load %arg4[%c0_17, %c0_18] : memref<16x128xbf16, #tpu.memory_space<vmem>>, vector<16x128xbf16>
    %cst_19 = arith.constant dense<0.000000e+00> : vector<96x128xf32>
    %38 = tpu.matmul %36, %37, %cst_19 {dimension_numbers = #tpu.dot_dimension_numbers<[1], [0], [0], [1], [0, 0, 1, 1], [], []>} : vector<96x16xbf16>, vector<16x128xbf16>, vector<96x128xf32> -> vector<96x128xf32>
    %39 = vector.broadcast %9 : vector<96x1xf32> to vector<96x128xf32>
    %40 = arith.mulf %38, %39 : vector<96x128xf32>
    %41 = arith.truncf %40 : vector<96x128xf32> to vector<96x128xbf16>
    %cst_20 = arith.constant dense<0.000000e+00> : vector<96x128xf32>
    %42 = tpu.matmul %23, %41, %cst_20 {dimension_numbers = #tpu.dot_dimension_numbers<[1], [0], [0], [1], [0, 0, 1, 1], [], []>} : vector<96x96xbf16>, vector<96x128xbf16>, vector<96x128xf32> -> vector<96x128xf32>
    %43 = vector.broadcast %9 : vector<96x1xf32> to vector<96x128xf32>
    %44 = arith.mulf %42, %43 : vector<96x128xf32>
    %cst_21 = arith.constant 0.000000e+00 : f32
    %45 = vector.broadcast %cst_21 : f32 to vector<96x128xf32>
    %46 = arith.maximumf %44, %45 : vector<96x128xf32>
    %47 = arith.truncf %46 : vector<96x128xf32> to vector<96x128xbf16>
    %c0_22 = arith.constant 0 : index
    %c0_23 = arith.constant 0 : index
    %48 = vector.load %arg5[%c0_22, %c0_23] : memref<128x128xbf16, #tpu.memory_space<vmem>>, vector<128x128xbf16>
    %cst_24 = arith.constant dense<0.000000e+00> : vector<96x128xf32>
    %49 = tpu.matmul %47, %48, %cst_24 {dimension_numbers = #tpu.dot_dimension_numbers<[1], [0], [0], [1], [0, 0, 1, 1], [], []>} : vector<96x128xbf16>, vector<128x128xbf16>, vector<96x128xf32> -> vector<96x128xf32>
    %50 = vector.broadcast %9 : vector<96x1xf32> to vector<96x128xf32>
    %51 = arith.mulf %49, %50 : vector<96x128xf32>
    %52 = arith.truncf %51 : vector<96x128xf32> to vector<96x128xbf16>
    %cst_25 = arith.constant dense<0.000000e+00> : vector<96x128xf32>
    %53 = tpu.matmul %23, %52, %cst_25 {dimension_numbers = #tpu.dot_dimension_numbers<[1], [0], [0], [1], [0, 0, 1, 1], [], []>} : vector<96x96xbf16>, vector<96x128xbf16>, vector<96x128xf32> -> vector<96x128xf32>
    %54 = vector.broadcast %9 : vector<96x1xf32> to vector<96x128xf32>
    %55 = arith.mulf %53, %54 : vector<96x128xf32>
    %56 = vector.extract_strided_slice %55 {offsets = [0, 0], sizes = [32, 128], strides = [1, 1]} : vector<96x128xf32> to vector<32x128xf32>
    %c0_26 = arith.constant 0 : index
    %c0_27 = arith.constant 0 : index
    %c0_28 = arith.constant 0 : index
    %57 = vector.load %arg6[%c0_26, %c0_27, %c0_28] : memref<3x32x128xf32, #tpu.memory_space<vmem>>, vector<1x32x128xf32>
    %58 = vector.shape_cast %57 : vector<1x32x128xf32> to vector<32x128xf32>
    %59 = vector.shape_cast %56 : vector<32x128xf32> to vector<1x32x128xf32>
    tpu.vector_store %arg6[%c0_26, %c0_27, %c0_28], %59 {strides = array<i32>} : memref<3x32x128xf32, #tpu.memory_space<vmem>>, vector<1x32x128xf32>,
    %60 = vector.extract_strided_slice %55 {offsets = [32, 0], sizes = [32, 128], strides = [1, 1]} : vector<96x128xf32> to vector<32x128xf32>
    %c1_29 = arith.constant 1 : index
    %c0_30 = arith.constant 0 : index
    %c0_31 = arith.constant 0 : index
    %61 = vector.load %arg6[%c1_29, %c0_30, %c0_31] : memref<3x32x128xf32, #tpu.memory_space<vmem>>, vector<1x32x128xf32>
    %62 = vector.shape_cast %61 : vector<1x32x128xf32> to vector<32x128xf32>
    %63 = vector.shape_cast %60 : vector<32x128xf32> to vector<1x32x128xf32>
    tpu.vector_store %arg6[%c1_29, %c0_30, %c0_31], %63 {strides = array<i32>} : memref<3x32x128xf32, #tpu.memory_space<vmem>>, vector<1x32x128xf32>,
    %64 = vector.extract_strided_slice %55 {offsets = [64, 0], sizes = [32, 128], strides = [1, 1]} : vector<96x128xf32> to vector<32x128xf32>
    %c2_32 = arith.constant 2 : index
    %c0_33 = arith.constant 0 : index
    %c0_34 = arith.constant 0 : index
    %65 = vector.load %arg6[%c2_32, %c0_33, %c0_34] : memref<3x32x128xf32, #tpu.memory_space<vmem>>, vector<1x32x128xf32>
    %66 = vector.shape_cast %65 : vector<1x32x128xf32> to vector<32x128xf32>
    %67 = vector.shape_cast %64 : vector<32x128xf32> to vector<1x32x128xf32>
    tpu.vector_store %arg6[%c2_32, %c0_33, %c0_34], %67 {strides = array<i32>} : memref<3x32x128xf32, #tpu.memory_space<vmem>>, vector<1x32x128xf32>,
    return
  }
}

</mosaic_0001>

<llo_original>
// kernel: encoder_forward.3
$region0: #{encoder_forward.3}
  #allocation0 [shape = 'u32[]', space=smem, size = 0x4, offset = 0x4, fixed_abs, tag = 'smem constant byte address 0x4 - core index']
  #allocation1 [shape = 'u32[144,128]{1,0:T(1,128)}', space=vmem, size = 0x12000, scoped, tag = 'internal scratch']
  %s0 = inlined_call_operand.vmem [shape: bf16[3,32,32], index: 0, kind: input, shape index: {}]
  %s1 = inlined_call_operand.vmem [shape: f32[3,32,1], index: 1, kind: input, shape index: {}]
  %s2 = inlined_call_operand.vmem [shape: bf16[32,16], index: 2, kind: input, shape index: {}]
  %s3 = inlined_call_operand.vmem [shape: bf16[3,1,16], index: 3, kind: input, shape index: {}]
  %s4 = inlined_call_operand.vmem [shape: bf16[16,128], index: 4, kind: input, shape index: {}]
  %s5 = inlined_call_operand.vmem [shape: bf16[128,128], index: 5, kind: input, shape index: {}]
  %s6 = inlined_call_operand.vmem [shape: f32[3,32,128], index: 6, kind: output, shape index: {}]
  %s7 = sld [smem:[#allocation0]]
  $region34: #{encoder_forward.3} parent=0
    _
  %s9 = ssub.s32 1, %s7
  %s10 = scalar_select 0, %s9, %s7
  // Predicated region
  $region2: #{encoder_forward.3} parent=0 // pred_check
    _
  $region3: #{encoder_forward.3} parent=0 // pred_check_branch
    %12 = sbr.rel (0) target = $region5
  $region4: #{encoder_forward.3} parent=0 // pred_region
    _
  $region5: #{encoder_forward.3} parent=0 // pred_fallthru
    _
  // Predicated region
  $region6: #{encoder_forward.3} parent=0 // pred_check
    _
  $region7: #{encoder_forward.3} parent=0 // pred_check_branch
    %14 = sbr.rel (0) target = $region9
  $region8: #{encoder_forward.3} parent=0 // pred_region
    _
  $region9: #{encoder_forward.3} parent=0 // pred_fallthru
    _
  // Predicated region
  $region10: #{encoder_forward.3} parent=0 // pred_check
    _
  $region11: #{encoder_forward.3} parent=0 // pred_check_branch
    %16 = sbr.rel (0) target = $region13
  $region12: #{encoder_forward.3} parent=0 // pred_region
    _
  $region13: #{encoder_forward.3} parent=0 // pred_fallthru
    _
  // Predicated region
  $region14: #{encoder_forward.3} parent=0 // pred_check
    _
  $region15: #{encoder_forward.3} parent=0 // pred_check_branch
    %18 = sbr.rel (0) target = $region17
  $region16: #{encoder_forward.3} parent=0 // pred_region
    _
  $region17: #{encoder_forward.3} parent=0 // pred_fallthru
    _
  // Predicated region
  $region18: #{encoder_forward.3} parent=0 // pred_check
    _
  $region19: #{encoder_forward.3} parent=0 // pred_check_branch
    %20 = sbr.rel (0) target = $region21
  $region20: #{encoder_forward.3} parent=0 // pred_region
    _
  $region21: #{encoder_forward.3} parent=0 // pred_fallthru
    _
  // Predicated region
  $region22: #{encoder_forward.3} parent=0 // pred_check
    _
  $region23: #{encoder_forward.3} parent=0 // pred_check_branch
    %22 = sbr.rel (0) target = $region25
  $region24: #{encoder_forward.3} parent=0 // pred_region
    _
  $region25: #{encoder_forward.3} parent=0 // pred_fallthru
    _
  %v24 = vld [vmem:[%s0] sm:$0xf]
  %v25 = vld [vmem:[%s0 + $0x4] sm:$0xf]
  %v26 = vld [vmem:[%s0 + $0x8] sm:$0xf]
  %v27 = vld [vmem:[%s0 + $0xc] sm:$0xf]
  %v28 = vld [vmem:[%s0 + $0x10] sm:$0xf]
  %v29 = vld [vmem:[%s0 + $0x14] sm:$0xf]
  %v30 = vld [vmem:[%s0 + $0x18] sm:$0xf]
  %v31 = vld [vmem:[%s0 + $0x1c] sm:$0xf]
  %v32 = vld [vmem:[%s0 + $0x20] sm:$0xf]
  %v33 = vld [vmem:[%s0 + $0x24] sm:$0xf]
  %v34 = vld [vmem:[%s0 + $0x28] sm:$0xf]
  %v35 = vld [vmem:[%s0 + $0x2c] sm:$0xf]
  %v36 = vld [vmem:[%s2] sm:$0xf]
  %v37 = vld [vmem:[%s2 + $0x4] sm:$0xf]
  %v38 = vld [vmem:[%s2 + $0x8] sm:$0xf]
  %v39 = vld [vmem:[%s2 + $0xc] sm:$0xf]
  %v40 = vld [vmem:[%s3] sm:$0x1]
  %v41 = vld [vmem:[%s3 + $0x1] sm:$0x1]
  %v42 = vld [vmem:[%s3 + $0x2] sm:$0x1]
  %v43 = vld [vmem:[%s1] sm:$0xff]
  %v44 = vld [vmem:[%s1 + $0x8] sm:$0xff]
  %v45 = vld [vmem:[%s1 + $0x10] sm:$0xff]
  %v46 = vld [vmem:[%s1 + $0x18] sm:$0xff]
  %s47 = scalar_lea.vmem %s1, 32
  %v48 = vld [vmem:[%s47] sm:$0xff]
  %v49 = vld [vmem:[%s47 + $0x8] sm:$0xff]
  %v50 = vld [vmem:[%s47 + $0x10] sm:$0xff]
  %v51 = vld [vmem:[%s47 + $0x18] sm:$0xff]
  %s52 = scalar_lea.vmem %s1, 64
  %v53 = vld [vmem:[%s52] sm:$0xff]
  %v54 = vld [vmem:[%s52 + $0x8] sm:$0xff]
  %v55 = vld [vmem:[%s52 + $0x10] sm:$0xff]
  %v56 = vld [vmem:[%s52 + $0x18] sm:$0xff]
  %v61 = vunpack.c.l.b16 %v24
  %v62 = vunpack.c.l.b16 %v25
  %v63 = vunpack.c.l.b16 %v26
  %v64 = vunpack.c.l.b16 %v27
  %v65 = vpack.c.b16 %v62, %v61
  %v66 = vpack.c.b16 %v64, %v63
  %vm67 = vcmask 261120
  %v70 = vsel %vm67, %v65, 0
  %v72 = vsel %vm67, %v66, 0
  %v77 = vunpack.c.l.b16 %v28
  %v78 = vunpack.c.l.b16 %v29
  %v79 = vunpack.c.l.b16 %v30
  %v80 = vunpack.c.l.b16 %v31
  %v81 = vpack.c.b16 %v78, %v77
  %v82 = vpack.c.b16 %v80, %v79
  %83 = vrot.lane.b32.xlu0 %v81, 32
  %v84 = vpop.permute.xlu0 %83
  %85 = vrot.lane.b32.xlu0 %v82, 32
  %v86 = vpop.permute.xlu0 %85
  %v88 = vsel %vm67, 0, %v84
  %v90 = vsel %vm67, 0, %v86
  %vm91 = vcmask 523264
  %v92 = vsel %vm91, %v88, 0
  %v93 = vsel %vm91, %v90, 0
  %v98 = vunpack.c.l.b16 %v32
  %v99 = vunpack.c.l.b16 %v33
  %v100 = vunpack.c.l.b16 %v34
  %v101 = vunpack.c.l.b16 %v35
  %v102 = vpack.c.b16 %v99, %v98
  %v103 = vpack.c.b16 %v101, %v100
  %104 = vrot.lane.b32.xlu0 %v102, 64
  %v105 = vpop.permute.xlu0 %104
  %106 = vrot.lane.b32.xlu0 %v103, 64
  %v107 = vpop.permute.xlu0 %106
  %v109 = vsel %vm91, 0, %v105
  %v111 = vsel %vm91, 0, %v107
  %v113 = vpack.i.b16 %v40, %v40
  %v115 = vlaneseq
  %v116 = vshrl.u32 %v115, 7
  %v117 = vsub.s32 0, %v116
  %v118 = vrot.slane %v113, %v117
  %v120 = vunpack.c.l.b16 %v118
  %v121 = vpack.c.b16 %v120, %v120
  %v123 = vmul.bf16 %v36, %v121
  %v124 = vmul.bf16 %v37, %v121
  %v125 = vmul.bf16 %v38, %v121
  %v126 = vmul.bf16 %v39, %v121
  %v128 = vpack.i.b16 %v41, %v41
  %v130 = vlaneseq
  %v131 = vshrl.u32 %v130, 7
  %v132 = vsub.s32 0, %v131
  %v133 = vrot.slane %v128, %v132
  %v135 = vunpack.c.l.b16 %v133
  %v136 = vpack.c.b16 %v135, %v135
  %v138 = vmul.bf16 %v36, %v136
  %v139 = vmul.bf16 %v37, %v136
  %v140 = vmul.bf16 %v38, %v136
  %v141 = vmul.bf16 %v39, %v136
  %v143 = vpack.i.b16 %v42, %v42
  %v145 = vlaneseq
  %v146 = vshrl.u32 %v145, 7
  %v147 = vsub.s32 0, %v146
  %v148 = vrot.slane %v143, %v147
  %v150 = vunpack.c.l.b16 %v148
  %v151 = vpack.c.b16 %v150, %v150
  %v153 = vmul.bf16 %v36, %v151
  %v154 = vmul.bf16 %v37, %v151
  %v155 = vmul.bf16 %v38, %v151
  %v156 = vmul.bf16 %v39, %v151
  %v161 = vunpack.c.l.b16 %v123
  %v162 = vunpack.c.l.b16 %v124
  %v163 = vunpack.c.l.b16 %v125
  %v164 = vunpack.c.l.b16 %v126
  %v165 = vpack.c.b16 %v162, %v161
  %v166 = vpack.c.b16 %v164, %v163
  %v171 = vunpack.c.l.b16 %v138
  %v172 = vunpack.c.l.b16 %v139
  %v173 = vunpack.c.l.b16 %v140
  %v174 = vunpack.c.l.b16 %v141
  %v175 = vpack.c.b16 %v172, %v171
  %v176 = vpack.c.b16 %v174, %v173
  %v181 = vunpack.c.l.b16 %v153
  %v182 = vunpack.c.l.b16 %v154
  %v183 = vunpack.c.l.b16 %v155
  %v184 = vunpack.c.l.b16 %v156
  %v185 = vpack.c.b16 %v182, %v181
  %v186 = vpack.c.b16 %v184, %v183
  %v187 = vld [vmem:[%s4] sm:$0xf]
  %v188 = vld [vmem:[%s4 + $0x4] sm:$0xf]
  %v191 = vunpack.c.l.b16 %v187
  %v192 = vunpack.c.l.b16 %v188
  %v193 = vpack.c.b16 %v192, %v191
  %vm195 = vcmask 130048
  %v197 = vsel %vm195, %v165, 0
  %v200 = vsel %vm195, %v166, 0
  %v203 = vsel %vm195, %v175, 0
  %v206 = vsel %vm195, %v176, 0
  %v209 = vsel %vm195, %v185, 0
  %v212 = vsel %vm195, %v186, 0
  %214 = vmatprep.subr.bf16.mxu0 0
  %215 = vmatpush1.bf16.msra.mxu0 0
  %216 = vmatprep.subr.bf16.mxu0 0
  %217 = vmatpush1.bf16.msra.mxu0 0
  %218 = vmatprep.subr.bf16.mxu0 0
  %219 = vmatpush1.bf16.msra.mxu0 0
  %220 = vmatprep.subr.bf16.mxu0 0
  %221 = vmatpush1.bf16.msra.mxu0 0
  %222 = vmatprep.subr.bf16.mxu0 0
  %223 = vmatpush1.bf16.msra.mxu0 0
  %224 = vmatprep.subr.bf16.mxu0 0
  %225 = vmatpush1.bf16.msra.mxu0 0
  %226 = vmatprep.subr.bf16.mxu0 0
  %227 = vmatpush1.bf16.msra.mxu0 0
  %228 = vmatprep.subr.bf16.mxu0 0
  %229 = vmatpush1.bf16.msra.mxu0 %v193
  %230 = vmatprep.subr.bf16.mxu0 0
  %231 = vmatpush2.bf16.msra.mxu0 0
  %232 = vmatprep.subr.bf16.mxu0 0
  %233 = vmatpush2.bf16.msra.mxu0 0
  %234 = vmatprep.subr.bf16.mxu0 0
  %235 = vmatpush2.bf16.msra.mxu0 0
  %236 = vmatprep.subr.bf16.mxu0 0
  %237 = vmatpush2.bf16.msra.mxu0 0
  %238 = vmatprep.subr.bf16.mxu0 0
  %239 = vmatpush2.bf16.msra.mxu0 0
  %240 = vmatprep.subr.bf16.mxu0 0
  %241 = vmatpush2.bf16.msra.mxu0 0
  %242 = vmatprep.subr.bf16.mxu0 0
  %243 = vmatpush2.bf16.msra.mxu0 0
  %244 = vmatprep.subr.bf16.mxu0 0
  %245 = vmatpush2.bf16.msra.mxu0 0
  %246 = vmatprep.mubr.bf16.mxu0 0
  %247 = vmatmul.mubr.bf16.gmra.mxu0 %v197
  %v248 = vpop.f32.mrf.mxu0
  %v249 = vadd.f32 0.0, %v248
  %v250 = vpop.f32.mrf.mxu0
  %v251 = vpop.f32.mrf.mxu0
  %v252 = vadd.f32 0.0, %v251
  %v253 = vpop.f32.mrf.mxu0
  %254 = vmatprep.mubr.bf16.mxu0 0
  %255 = vmatmul.mubr.bf16.gmra.mxu0 %v200
  %v256 = vpop.f32.mrf.mxu0
  %v257 = vadd.f32 0.0, %v256
  %v258 = vpop.f32.mrf.mxu0
  %v259 = vpop.f32.mrf.mxu0
  %v260 = vadd.f32 0.0, %v259
  %v261 = vpop.f32.mrf.mxu0
  %262 = vmatprep.mubr.bf16.mxu0 0
  %263 = vmatmul.mubr.bf16.gmra.mxu0 %v203
  %v264 = vpop.f32.mrf.mxu0
  %v265 = vadd.f32 0.0, %v264
  %v266 = vpop.f32.mrf.mxu0
  %v267 = vpop.f32.mrf.mxu0
  %v268 = vadd.f32 0.0, %v267
  %v269 = vpop.f32.mrf.mxu0
  %270 = vmatprep.mubr.bf16.mxu0 0
  %271 = vmatmul.mubr.bf16.gmra.mxu0 %v206
  %v272 = vpop.f32.mrf.mxu0
  %v273 = vadd.f32 0.0, %v272
  %v274 = vpop.f32.mrf.mxu0
  %v275 = vpop.f32.mrf.mxu0
  %v276 = vadd.f32 0.0, %v275
  %v277 = vpop.f32.mrf.mxu0
  %278 = vmatprep.mubr.bf16.mxu0 0
  %279 = vmatmul.mubr.bf16.gmra.mxu0 %v209
  %v280 = vpop.f32.mrf.mxu0
  %v281 = vadd.f32 0.0, %v280
  %v282 = vpop.f32.mrf.mxu0
  %v283 = vpop.f32.mrf.mxu0
  %v284 = vadd.f32 0.0, %v283
  %v285 = vpop.f32.mrf.mxu0
  %286 = vmatprep.mubr.bf16.mxu0 0
  %287 = vmatmul.mubr.bf16.gmra.mxu0 %v212
  %v288 = vpop.f32.mrf.mxu0
  %v289 = vadd.f32 0.0, %v288
  %v290 = vpop.f32.mrf.mxu0
  %v291 = vpop.f32.mrf.mxu0
  %v292 = vadd.f32 0.0, %v291
  %v293 = vpop.f32.mrf.mxu0
  %294 = vdwg.mxu0
  %296 = vset.pattern.permute.xlu0 0
  %297 = vperm.xlu0 %296, %v43
  %v298 = vpop.permute.xlu0 %297
  %301 = vset.pattern.permute.xlu0 0
  %302 = vperm.xlu0 %301, %v44
  %v303 = vpop.permute.xlu0 %302
  %306 = vset.pattern.permute.xlu0 0
  %307 = vperm.xlu0 %306, %v45
  %v308 = vpop.permute.xlu0 %307
  %311 = vset.pattern.permute.xlu0 0
  %312 = vperm.xlu0 %311, %v46
  %v313 = vpop.permute.xlu0 %312
  %316 = vset.pattern.permute.xlu0 0
  %317 = vperm.xlu0 %316, %v48
  %v318 = vpop.permute.xlu0 %317
  %321 = vset.pattern.permute.xlu0 0
  %322 = vperm.xlu0 %321, %v49
  %v323 = vpop.permute.xlu0 %322
  %326 = vset.pattern.permute.xlu0 0
  %327 = vperm.xlu0 %326, %v50
  %v328 = vpop.permute.xlu0 %327
  %331 = vset.pattern.permute.xlu0 0
  %332 = vperm.xlu0 %331, %v51
  %v333 = vpop.permute.xlu0 %332
  %336 = vset.pattern.permute.xlu0 0
  %337 = vperm.xlu0 %336, %v53
  %v338 = vpop.permute.xlu0 %337
  %341 = vset.pattern.permute.xlu0 0
  %342 = vperm.xlu0 %341, %v54
  %v343 = vpop.permute.xlu0 %342
  %346 = vset.pattern.permute.xlu0 0
  %347 = vperm.xlu0 %346, %v55
  %v348 = vpop.permute.xlu0 %347
  %351 = vset.pattern.permute.xlu0 0
  %352 = vperm.xlu0 %351, %v56
  %v353 = vpop.permute.xlu0 %352
  %v355 = vmul.f32 %v249, %v298
  %v356 = vmul.f32 %v252, %v303
  %v357 = vmul.f32 %v257, %v308
  %v358 = vmul.f32 %v260, %v313
  %v359 = vmul.f32 %v265, %v318
  %v360 = vmul.f32 %v268, %v323
  %v361 = vmul.f32 %v273, %v328
  %v362 = vmul.f32 %v276, %v333
  %v363 = vmul.f32 %v281, %v338
  %v364 = vmul.f32 %v284, %v343
  %v365 = vmul.f32 %v289, %v348
  %v366 = vmul.f32 %v292, %v353
  %v367 = vpack.c.bf16 %v356, %v355
  %v368 = vpack.c.bf16 %v358, %v357
  %v369 = vpack.c.bf16 %v360, %v359
  %v370 = vpack.c.bf16 %v362, %v361
  %v371 = vpack.c.bf16 %v364, %v363
  %v372 = vpack.c.bf16 %v366, %v365
  %vm373 = vcmask 785408
  %v374 = vsel %vm373, %v70, 0
  %v376 = vsel %vm373, %v72, 0
  %v378 = vsel %vm373, %v92, 0
  %v380 = vsel %vm373, %v93, 0
  %v382 = vsel %vm373, %v109, 0
  %v384 = vsel %vm373, %v111, 0
  %386 = vmatprep.subr.bf16.mxu0 0
  %387 = vmatpush1.bf16.msra.mxu0 0
  %388 = vmatprep.subr.bf16.mxu0 0
  %389 = vmatpush1.bf16.msra.mxu0 0
  %390 = vmatprep.subr.bf16.mxu0 0
  %391 = vmatpush1.bf16.msra.mxu0 %v372
  %392 = vmatprep.subr.bf16.mxu0 0
  %393 = vmatpush1.bf16.msra.mxu0 %v371
  %394 = vmatprep.subr.bf16.mxu0 0
  %395 = vmatpush1.bf16.msra.mxu0 %v370
  %396 = vmatprep.subr.bf16.mxu0 0
  %397 = vmatpush1.bf16.msra.mxu0 %v369
  %398 = vmatprep.subr.bf16.mxu0 0
  %399 = vmatpush1.bf16.msra.mxu0 %v368
  %400 = vmatprep.subr.bf16.mxu0 0
  %401 = vmatpush1.bf16.msra.mxu0 %v367
  %402 = vmatprep.subr.bf16.mxu0 0
  %403 = vmatpush2.bf16.msra.mxu0 0
  %404 = vmatprep.subr.bf16.mxu0 0
  %405 = vmatpush2.bf16.msra.mxu0 0
  %406 = vmatprep.subr.bf16.mxu0 0
  %407 = vmatpush2.bf16.msra.mxu0 0
  %408 = vmatprep.subr.bf16.mxu0 0
  %409 = vmatpush2.bf16.msra.mxu0 0
  %410 = vmatprep.subr.bf16.mxu0 0
  %411 = vmatpush2.bf16.msra.mxu0 0
  %412 = vmatprep.subr.bf16.mxu0 0
  %413 = vmatpush2.bf16.msra.mxu0 0
  %414 = vmatprep.subr.bf16.mxu0 0
  %415 = vmatpush2.bf16.msra.mxu0 0
  %416 = vmatprep.subr.bf16.mxu0 0
  %417 = vmatpush2.bf16.msra.mxu0 0
  %418 = vmatprep.mubr.bf16.mxu0 0
  %419 = vmatmul.mubr.bf16.gmra.mxu0 %v374
  %v420 = vpop.f32.mrf.mxu0
  %v421 = vadd.f32 0.0, %v420
  %v422 = vpop.f32.mrf.mxu0
  %v423 = vpop.f32.mrf.mxu0
  %v424 = vadd.f32 0.0, %v423
  %v425 = vpop.f32.mrf.mxu0
  %426 = vmatprep.mubr.bf16.mxu0 0
  %427 = vmatmul.mubr.bf16.gmra.mxu0 %v376
  %v428 = vpop.f32.mrf.mxu0
  %v429 = vadd.f32 0.0, %v428
  %v430 = vpop.f32.mrf.mxu0
  %v431 = vpop.f32.mrf.mxu0
  %v432 = vadd.f32 0.0, %v431
  %v433 = vpop.f32.mrf.mxu0
  %434 = vmatprep.mubr.bf16.mxu0 0
  %435 = vmatmul.mubr.bf16.gmra.mxu0 %v378
  %v436 = vpop.f32.mrf.mxu0
  %v437 = vadd.f32 0.0, %v436
  %v438 = vpop.f32.mrf.mxu0
  %v439 = vpop.f32.mrf.mxu0
  %v440 = vadd.f32 0.0, %v439
  %v441 = vpop.f32.mrf.mxu0
  %442 = vmatprep.mubr.bf16.mxu0 0
  %443 = vmatmul.mubr.bf16.gmra.mxu0 %v380
  %v444 = vpop.f32.mrf.mxu0
  %v445 = vadd.f32 0.0, %v444
  %v446 = vpop.f32.mrf.mxu0
  %v447 = vpop.f32.mrf.mxu0
  %v448 = vadd.f32 0.0, %v447
  %v449 = vpop.f32.mrf.mxu0
  %450 = vmatprep.mubr.bf16.mxu0 0
  %451 = vmatmul.mubr.bf16.gmra.mxu0 %v382
  %v452 = vpop.f32.mrf.mxu0
  %v453 = vadd.f32 0.0, %v452
  %v454 = vpop.f32.mrf.mxu0
  %v455 = vpop.f32.mrf.mxu0
  %v456 = vadd.f32 0.0, %v455
  %v457 = vpop.f32.mrf.mxu0
  %458 = vmatprep.mubr.bf16.mxu0 0
  %459 = vmatmul.mubr.bf16.gmra.mxu0 %v384
  %v460 = vpop.f32.mrf.mxu0
  %v461 = vadd.f32 0.0, %v460
  %v462 = vpop.f32.mrf.mxu0
  %v463 = vpop.f32.mrf.mxu0
  %v464 = vadd.f32 0.0, %v463
  %v465 = vpop.f32.mrf.mxu0
  %466 = vdwg.mxu0
  %v467 = vmul.f32 %v421, %v298
  %v468 = vmul.f32 %v424, %v303
  %v469 = vmul.f32 %v429, %v308
  %v470 = vmul.f32 %v432, %v313
  %v471 = vmul.f32 %v437, %v318
  %v472 = vmul.f32 %v440, %v323
  %v473 = vmul.f32 %v445, %v328
  %v474 = vmul.f32 %v448, %v333
  %v475 = vmul.f32 %v453, %v338
  %v476 = vmul.f32 %v456, %v343
  %v477 = vmul.f32 %v461, %v348
  %v478 = vmul.f32 %v464, %v353
  %v479 = vmax.f32 %v467, 0.0
  %v480 = vmax.f32 %v468, 0.0
  %v481 = vmax.f32 %v469, 0.0
  %v482 = vmax.f32 %v470, 0.0
  %v483 = vmax.f32 %v471, 0.0
  %v484 = vmax.f32 %v472, 0.0
  %v485 = vmax.f32 %v473, 0.0
  %v486 = vmax.f32 %v474, 0.0
  %v487 = vmax.f32 %v475, 0.0
  %v488 = vmax.f32 %v476, 0.0
  %v489 = vmax.f32 %v477, 0.0
  %v490 = vmax.f32 %v478, 0.0
  %v491 = vpack.c.bf16 %v480, %v479
  %v492 = vpack.c.bf16 %v482, %v481
  %v493 = vpack.c.bf16 %v484, %v483
  %v494 = vpack.c.bf16 %v486, %v485
  %v495 = vpack.c.bf16 %v488, %v487
  %v496 = vpack.c.bf16 %v490, %v489
  %v497 = vld [vmem:[%s5] sm:$0xf]
  %v498 = vld [vmem:[%s5 + $0x4] sm:$0xf]
  %v499 = vld [vmem:[%s5 + $0x8] sm:$0xf]
  %v500 = vld [vmem:[%s5 + $0xc] sm:$0xf]
  %v501 = vld [vmem:[%s5 + $0x10] sm:$0xf]
  %v502 = vld [vmem:[%s5 + $0x14] sm:$0xf]
  %v503 = vld [vmem:[%s5 + $0x18] sm:$0xf]
  %v504 = vld [vmem:[%s5 + $0x1c] sm:$0xf]
  %v505 = vld [vmem:[%s5 + $0x20] sm:$0xf]
  %v506 = vld [vmem:[%s5 + $0x24] sm:$0xf]
  %v507 = vld [vmem:[%s5 + $0x28] sm:$0xf]
  %v508 = vld [vmem:[%s5 + $0x2c] sm:$0xf]
  %v509 = vld [vmem:[%s5 + $0x30] sm:$0xf]
  %v510 = vld [vmem:[%s5 + $0x34] sm:$0xf]
  %v511 = vld [vmem:[%s5 + $0x38] sm:$0xf]
  %v512 = vld [vmem:[%s5 + $0x3c] sm:$0xf]
  %v529 = vunpack.c.l.b16 %v497
  %v530 = vunpack.c.l.b16 %v498
  %v531 = vunpack.c.l.b16 %v499
  %v532 = vunpack.c.l.b16 %v500
  %v533 = vunpack.c.l.b16 %v501
  %v534 = vunpack.c.l.b16 %v502
  %v535 = vunpack.c.l.b16 %v503
  %v536 = vunpack.c.l.b16 %v504
  %v537 = vunpack.c.l.b16 %v505
  %v538 = vunpack.c.l.b16 %v506
  %v539 = vunpack.c.l.b16 %v507
  %v540 = vunpack.c.l.b16 %v508
  %v541 = vunpack.c.l.b16 %v509
  %v542 = vunpack.c.l.b16 %v510
  %v543 = vunpack.c.l.b16 %v511
  %v544 = vunpack.c.l.b16 %v512
  %v545 = vpack.c.b16 %v530, %v529
  %v546 = vpack.c.b16 %v532, %v531
  %v547 = vpack.c.b16 %v534, %v533
  %v548 = vpack.c.b16 %v536, %v535
  %v549 = vpack.c.b16 %v538, %v537
  %v550 = vpack.c.b16 %v540, %v539
  %v551 = vpack.c.b16 %v542, %v541
  %v552 = vpack.c.b16 %v544, %v543
  %561 = vmatprep.subr.bf16.mxu0 0
  %562 = vmatpush1.bf16.msra.mxu0 %v552
  %563 = vmatprep.subr.bf16.mxu0 0
  %564 = vmatpush1.bf16.msra.mxu0 %v551
  %565 = vmatprep.subr.bf16.mxu0 0
  %566 = vmatpush1.bf16.msra.mxu0 %v550
  %567 = vmatprep.subr.bf16.mxu0 0
  %568 = vmatpush1.bf16.msra.mxu0 %v549
  %569 = vmatprep.subr.bf16.mxu0 0
  %570 = vmatpush1.bf16.msra.mxu0 %v548
  %571 = vmatprep.subr.bf16.mxu0 0
  %572 = vmatpush1.bf16.msra.mxu0 %v547
  %573 = vmatprep.subr.bf16.mxu0 0
  %574 = vmatpush1.bf16.msra.mxu0 %v546
  %575 = vmatprep.subr.bf16.mxu0 0
  %576 = vmatpush1.bf16.msra.mxu0 %v545
  %577 = vmatprep.subr.bf16.mxu0 0
  %578 = vmatpush2.bf16.msra.mxu0 0
  %579 = vmatprep.subr.bf16.mxu0 0
  %580 = vmatpush2.bf16.msra.mxu0 0
  %581 = vmatprep.subr.bf16.mxu0 0
  %582 = vmatpush2.bf16.msra.mxu0 0
  %583 = vmatprep.subr.bf16.mxu0 0
  %584 = vmatpush2.bf16.msra.mxu0 0
  %585 = vmatprep.subr.bf16.mxu0 0
  %586 = vmatpush2.bf16.msra.mxu0 0
  %587 = vmatprep.subr.bf16.mxu0 0
  %588 = vmatpush2.bf16.msra.mxu0 0
  %589 = vmatprep.subr.bf16.mxu0 0
  %590 = vmatpush2.bf16.msra.mxu0 0
  %591 = vmatprep.subr.bf16.mxu0 0
  %592 = vmatpush2.bf16.msra.mxu0 0
  %593 = vmatprep.mubr.bf16.mxu0 0
  %594 = vmatmul.mubr.bf16.gmra.mxu0 %v491
  %v595 = vpop.f32.mrf.mxu0
  %v596 = vadd.f32 0.0, %v595
  %v597 = vpop.f32.mrf.mxu0
  %v598 = vpop.f32.mrf.mxu0
  %v599 = vadd.f32 0.0, %v598
  %v600 = vpop.f32.mrf.mxu0
  %601 = vmatprep.mubr.bf16.mxu0 0
  %602 = vmatmul.mubr.bf16.gmra.mxu0 %v492
  %v603 = vpop.f32.mrf.mxu0
  %v604 = vadd.f32 0.0, %v603
  %v605 = vpop.f32.mrf.mxu0
  %v606 = vpop.f32.mrf.mxu0
  %v607 = vadd.f32 0.0, %v606
  %v608 = vpop.f32.mrf.mxu0
  %609 = vmatprep.mubr.bf16.mxu0 0
  %610 = vmatmul.mubr.bf16.gmra.mxu0 %v493
  %v611 = vpop.f32.mrf.mxu0
  %v612 = vadd.f32 0.0, %v611
  %v613 = vpop.f32.mrf.mxu0
  %v614 = vpop.f32.mrf.mxu0
  %v615 = vadd.f32 0.0, %v614
  %v616 = vpop.f32.mrf.mxu0
  %617 = vmatprep.mubr.bf16.mxu0 0
  %618 = vmatmul.mubr.bf16.gmra.mxu0 %v494
  %v619 = vpop.f32.mrf.mxu0
  %v620 = vadd.f32 0.0, %v619
  %v621 = vpop.f32.mrf.mxu0
  %v622 = vpop.f32.mrf.mxu0
  %v623 = vadd.f32 0.0, %v622
  %v624 = vpop.f32.mrf.mxu0
  %625 = vmatprep.mubr.bf16.mxu0 0
  %626 = vmatmul.mubr.bf16.gmra.mxu0 %v495
  %v627 = vpop.f32.mrf.mxu0
  %v628 = vadd.f32 0.0, %v627
  %v629 = vpop.f32.mrf.mxu0
  %v630 = vpop.f32.mrf.mxu0
  %v631 = vadd.f32 0.0, %v630
  %v632 = vpop.f32.mrf.mxu0
  %633 = vmatprep.mubr.bf16.mxu0 0
  %634 = vmatmul.mubr.bf16.gmra.mxu0 %v496
  %v635 = vpop.f32.mrf.mxu0
  %v636 = vadd.f32 0.0, %v635
  %v637 = vpop.f32.mrf.mxu0
  %v638 = vpop.f32.mrf.mxu0
  %v639 = vadd.f32 0.0, %v638
  %v640 = vpop.f32.mrf.mxu0
  %641 = vdwg.mxu0
  %v642 = vmul.f32 %v596, %v298
  %v643 = vmul.f32 %v599, %v303
  %v644 = vmul.f32 %v604, %v308
  %v645 = vmul.f32 %v607, %v313
  %v646 = vmul.f32 %v612, %v318
  %v647 = vmul.f32 %v615, %v323
  %v648 = vmul.f32 %v620, %v328
  %v649 = vmul.f32 %v623, %v333
  %v650 = vmul.f32 %v628, %v338
  %v651 = vmul.f32 %v631, %v343
  %v652 = vmul.f32 %v636, %v348
  %v653 = vmul.f32 %v639, %v353
  %v654 = vpack.c.bf16 %v643, %v642
  %v655 = vpack.c.bf16 %v645, %v644
  %v656 = vpack.c.bf16 %v647, %v646
  %v657 = vpack.c.bf16 %v649, %v648
  %v658 = vpack.c.bf16 %v651, %v650
  %v659 = vpack.c.bf16 %v653, %v652
  %660 = vmatprep.subr.bf16.mxu0 0
  %661 = vmatpush1.bf16.msra.mxu0 0
  %662 = vmatprep.subr.bf16.mxu0 0
  %663 = vmatpush1.bf16.msra.mxu0 0
  %664 = vmatprep.subr.bf16.mxu0 0
  %665 = vmatpush1.bf16.msra.mxu0 %v659
  %666 = vmatprep.subr.bf16.mxu0 0
  %667 = vmatpush1.bf16.msra.mxu0 %v658
  %668 = vmatprep.subr.bf16.mxu0 0
  %669 = vmatpush1.bf16.msra.mxu0 %v657
  %670 = vmatprep.subr.bf16.mxu0 0
  %671 = vmatpush1.bf16.msra.mxu0 %v656
  %672 = vmatprep.subr.bf16.mxu0 0
  %673 = vmatpush1.bf16.msra.mxu0 %v655
  %674 = vmatprep.subr.bf16.mxu0 0
  %675 = vmatpush1.bf16.msra.mxu0 %v654
  %676 = vmatprep.subr.bf16.mxu0 0
  %677 = vmatpush2.bf16.msra.mxu0 0
  %678 = vmatprep.subr.bf16.mxu0 0
  %679 = vmatpush2.bf16.msra.mxu0 0
  %680 = vmatprep.subr.bf16.mxu0 0
  %681 = vmatpush2.bf16.msra.mxu0 0
  %682 = vmatprep.subr.bf16.mxu0 0
  %683 = vmatpush2.bf16.msra.mxu0 0
  %684 = vmatprep.subr.bf16.mxu0 0
  %685 = vmatpush2.bf16.msra.mxu0 0
  %686 = vmatprep.subr.bf16.mxu0 0
  %687 = vmatpush2.bf16.msra.mxu0 0
  %688 = vmatprep.subr.bf16.mxu0 0
  %689 = vmatpush2.bf16.msra.mxu0 0
  %690 = vmatprep.subr.bf16.mxu0 0
  %691 = vmatpush2.bf16.msra.mxu0 0
  %692 = vmatprep.mubr.bf16.mxu0 0
  %693 = vmatmul.mubr.bf16.gmra.mxu0 %v374
  %v694 = vpop.f32.mrf.mxu0
  %v695 = vadd.f32 0.0, %v694
  %v696 = vpop.f32.mrf.mxu0
  %v697 = vpop.f32.mrf.mxu0
  %v698 = vadd.f32 0.0, %v697
  %v699 = vpop.f32.mrf.mxu0
  %700 = vmatprep.mubr.bf16.mxu0 0
  %701 = vmatmul.mubr.bf16.gmra.mxu0 %v376
  %v702 = vpop.f32.mrf.mxu0
  %v703 = vadd.f32 0.0, %v702
  %v704 = vpop.f32.mrf.mxu0
  %v705 = vpop.f32.mrf.mxu0
  %v706 = vadd.f32 0.0, %v705
  %v707 = vpop.f32.mrf.mxu0
  %708 = vmatprep.mubr.bf16.mxu0 0
  %709 = vmatmul.mubr.bf16.gmra.mxu0 %v378
  %v710 = vpop.f32.mrf.mxu0
  %v711 = vadd.f32 0.0, %v710
  %v712 = vpop.f32.mrf.mxu0
  %v713 = vpop.f32.mrf.mxu0
  %v714 = vadd.f32 0.0, %v713
  %v715 = vpop.f32.mrf.mxu0
  %716 = vmatprep.mubr.bf16.mxu0 0
  %717 = vmatmul.mubr.bf16.gmra.mxu0 %v380
  %v718 = vpop.f32.mrf.mxu0
  %v719 = vadd.f32 0.0, %v718
  %v720 = vpop.f32.mrf.mxu0
  %v721 = vpop.f32.mrf.mxu0
  %v722 = vadd.f32 0.0, %v721
  %v723 = vpop.f32.mrf.mxu0
  %724 = vmatprep.mubr.bf16.mxu0 0
  %725 = vmatmul.mubr.bf16.gmra.mxu0 %v382
  %v726 = vpop.f32.mrf.mxu0
  %v727 = vadd.f32 0.0, %v726
  %v728 = vpop.f32.mrf.mxu0
  %v729 = vpop.f32.mrf.mxu0
  %v730 = vadd.f32 0.0, %v729
  %v731 = vpop.f32.mrf.mxu0
  %732 = vmatprep.mubr.bf16.mxu0 0
  %733 = vmatmul.mubr.bf16.gmra.mxu0 %v384
  %v734 = vpop.f32.mrf.mxu0
  %v735 = vadd.f32 0.0, %v734
  %v736 = vpop.f32.mrf.mxu0
  %v737 = vpop.f32.mrf.mxu0
  %v738 = vadd.f32 0.0, %v737
  %v739 = vpop.f32.mrf.mxu0
  %740 = vdwg.mxu0
  %v741 = vmul.f32 %v695, %v298
  %v742 = vmul.f32 %v698, %v303
  %v743 = vmul.f32 %v703, %v308
  %v744 = vmul.f32 %v706, %v313
  %v745 = vmul.f32 %v711, %v318
  %v746 = vmul.f32 %v714, %v323
  %v747 = vmul.f32 %v719, %v328
  %v748 = vmul.f32 %v722, %v333
  %v749 = vmul.f32 %v727, %v338
  %v750 = vmul.f32 %v730, %v343
  %v751 = vmul.f32 %v735, %v348
  %v752 = vmul.f32 %v738, %v353
  %753 = vst [vmem:[%s6] sm:$0xff] %v741
  %754 = vst [vmem:[%s6 + $0x8] sm:$0xff] %v742
  %755 = vst [vmem:[%s6 + $0x10] sm:$0xff] %v743
  %756 = vst [vmem:[%s6 + $0x18] sm:$0xff] %v744
  %s757 = scalar_lea.vmem %s6, 32
  %758 = vst [vmem:[%s757] sm:$0xff] %v745
  %759 = vst [vmem:[%s757 + $0x8] sm:$0xff] %v746
  %760 = vst [vmem:[%s757 + $0x10] sm:$0xff] %v747
  %761 = vst [vmem:[%s757 + $0x18] sm:$0xff] %v748
  %s762 = scalar_lea.vmem %s6, 64
  %763 = vst [vmem:[%s762] sm:$0xff] %v749
  %764 = vst [vmem:[%s762 + $0x8] sm:$0xff] %v750
  %765 = vst [vmem:[%s762 + $0x10] sm:$0xff] %v751
  %766 = vst [vmem:[%s762 + $0x18] sm:$0xff] %v752
  // Predicated region
  $region26: #{encoder_forward.3} parent=0 // pred_check
    _
  $region27: #{encoder_forward.3} parent=0 // pred_check_branch
    %768 = sbr.rel (0) target = $region29
  $region28: #{encoder_forward.3} parent=0 // pred_region
    _
  $region29: #{encoder_forward.3} parent=0 // pred_fallthru
    _
  // Predicated region
  $region30: #{encoder_forward.3} parent=0 // pred_check
    _
  $region31: #{encoder_forward.3} parent=0 // pred_check_branch
    %770 = sbr.rel (0) target = $region33
  $region32: #{encoder_forward.3} parent=0 // pred_region
    _
  $region33: #{encoder_forward.3} parent=0 // pred_fallthru
    _

</llo_original>
